<compile_context>
chip_gen: v5e
topology: v5e:2x2
jax: 0.10.0
libtpu: 0.0.40
codegen_flags: <defaults>
</compile_context>

<pallas_src>
import functools

import jax
import jax.numpy as jnp
from jax.experimental import pallas as pl
from jax.experimental.pallas import tpu as pltpu

LOG_STD_MIN = -20.0
LOG_STD_MAX = 2.0

LANE = 128          # TPU lane width; hidden/head axes are padded lane-dense.
SUBLANE = 8
HEAD_SPLIT = 64     # head output lanes [0, 64) = mean, [64, 128) = log_std

# packed parameter slab layout (all blocks 128 lanes wide, 16-aligned rows)
_W1_OFF = 0         # rows [0, 128):   W1  (logical [num_inputs, hidden])
_W2_OFF = 128       # rows [128, 256): W2  (logical [hidden, hidden])
_WH_OFF = 256       # rows [256, 384): fused head weights (mean | log_std)
_B_OFF = 384        # bias/clamp block: b1, b2, b_head, clamp_lo, clamp_hi
P_ROWS = 400        # multiple of 16 so bf16 slabs stay sublane-tile aligned


def _round_up(x, m):
    return (x + m - 1) // m * m


def _cdiv(a, b):
    return (a + b - 1) // b


def _choose_tiling(batch, sub):
    """Pick (tile_b, b_pad). Tiles up to 512 rows; >=2 grid steps when big."""
    max_tile = 512          # ~85% of measured HBM roofline; VMEM use is tiny
    if batch <= 64:         # tiny batch: one tile, overhead-dominated anyway
        tile_b = _round_up(batch, sub)
        return tile_b, tile_b
    n_tiles = max(2, _cdiv(batch, max_tile))   # >=2 steps: both v7x TCs busy
    tile_b = _round_up(_cdiv(batch, n_tiles), sub)
    return tile_b, tile_b * n_tiles


def policy_kernel(x_ref, p_ref, out_ref, *, f_pad):
    """Fused forward: 2x (linear + ReLU) + one fused mean/log_std head."""
    x = x_ref[...]                                     # [tile_b, f_pad]

    # static, aligned slices of the single parameter slab (one DMA for all).
    w1 = p_ref[_W1_OFF:_W1_OFF + f_pad, :]             # [f_pad, 128]
    w2 = p_ref[_W2_OFF:_W2_OFF + LANE, :]              # [128, 128]
    wh = p_ref[_WH_OFF:_WH_OFF + LANE, :]              # [128, 128]
    bias_blk = p_ref[_B_OFF:_B_OFF + 16, :]            # [16, 128]
    b1 = bias_blk[0:1, :]
    b2 = bias_blk[1:2, :]
    bh = bias_blk[2:3, :]
    clamp_lo = bias_blk[3:4, :]                        # -inf | LOG_STD_MIN
    clamp_hi = bias_blk[4:5, :]                        # +inf | LOG_STD_MAX

    # linear1 + ReLU
    h1 = jnp.dot(x, w1, preferred_element_type=jnp.float32) + b1
    h1 = jnp.maximum(h1, 0.0)

    # linear2 + ReLU
    h2 = jnp.dot(h1.astype(w2.dtype), w2, preferred_element_type=jnp.float32) + b2
    h2 = jnp.maximum(h2, 0.0)

    # fused mean / log_std head: one MXU pass, one lane-dense store.
    head = jnp.dot(h2.astype(wh.dtype), wh, preferred_element_type=jnp.float32) + bh

    # per-lane clamp via precomputed rows (no iota / select): mean lanes see
    # [-inf, +inf] (no-op), log_std lanes see [LOG_STD_MIN, LOG_STD_MAX].
    head = jnp.minimum(jnp.maximum(head, clamp_lo), clamp_hi)

    out_ref[...] = head.astype(out_ref.dtype)


def pack_params(params, num_inputs, num_actions, hidden_size, dtype=jnp.float32):
    """Pack all weights/biases into one zero-padded [400, 128] slab (1 DMA)."""
    assert num_inputs <= LANE and hidden_size <= LANE
    assert num_actions <= HEAD_SPLIT

    slab = jnp.zeros((P_ROWS, LANE), dtype=jnp.float32)
    slab = slab.at[_W1_OFF:_W1_OFF + num_inputs, :hidden_size].set(params["w1"])
    slab = slab.at[_W2_OFF:_W2_OFF + hidden_size, :hidden_size].set(params["w2"])
    # fused head: mean weights in lanes [0, num_actions), log_std in [64, 64+num_actions)
    slab = slab.at[_WH_OFF:_WH_OFF + hidden_size, :num_actions].set(params["wm"])
    slab = slab.at[_WH_OFF:_WH_OFF + hidden_size,
                   HEAD_SPLIT:HEAD_SPLIT + num_actions].set(params["ws"])
    slab = slab.at[_B_OFF + 0, :hidden_size].set(params["b1"][0])
    slab = slab.at[_B_OFF + 1, :hidden_size].set(params["b2"][0])
    slab = slab.at[_B_OFF + 2, :num_actions].set(params["bm"][0])
    slab = slab.at[_B_OFF + 2, HEAD_SPLIT:HEAD_SPLIT + num_actions].set(params["bs"][0])
    # clamp rows: mean lanes pass through, log_std lanes clamp to [MIN, MAX].
    clamp_lo = jnp.full((LANE,), -jnp.inf, jnp.float32).at[HEAD_SPLIT:].set(LOG_STD_MIN)
    clamp_hi = jnp.full((LANE,), jnp.inf, jnp.float32).at[HEAD_SPLIT:].set(LOG_STD_MAX)
    slab = slab.at[_B_OFF + 3].set(clamp_lo)
    slab = slab.at[_B_OFF + 4].set(clamp_hi)
    return slab.astype(dtype)


@functools.partial(jax.jit, static_argnames=("num_actions",))
def policy_forward(state, packed, *, num_actions):
    """state: [B, num_inputs]; packed: [400, 128] parameter slab."""
    B, num_inputs = state.shape
    dtype = packed.dtype
    sub = 16 if dtype == jnp.bfloat16 else SUBLANE     # bf16 packs 2 rows/sublane
    f_pad = _round_up(num_inputs, 16)                  # narrow lane slab, not 128
    assert f_pad <= LANE

    tile_b, b_pad = _choose_tiling(B, sub)
    grid = (b_pad // tile_b,)

    x = state.astype(dtype)
    if (b_pad, f_pad) != (B, num_inputs):
        # small zero-pad (<=1.1x input bytes); no 128-lane inflation anymore.
        x = jnp.zeros((b_pad, f_pad), dtype).at[:B, :num_inputs].set(x)

    out = pl.pallas_call(
        functools.partial(policy_kernel, f_pad=f_pad),
        out_shape=jax.ShapeDtypeStruct((b_pad, LANE), dtype),
        grid=grid,
        in_specs=[
            pl.BlockSpec((tile_b, f_pad), lambda i: (i, 0)),   # batch tiles
            pl.BlockSpec((P_ROWS, LANE), lambda i: (0, 0)),    # whole param slab
        ],
        out_specs=pl.BlockSpec((tile_b, LANE), lambda i: (i, 0)),
        compiler_params=pltpu.CompilerParams(
            dimension_semantics=("parallel",)),                # v7x: both TCs
    )(x, packed)

    mean = out[:B, :num_actions].astype(jnp.float32)
    log_std = out[:B, HEAD_SPLIT:HEAD_SPLIT + num_actions].astype(jnp.float32)
    return mean, log_std


def init_params(key, num_inputs, num_actions, hidden_size, init_w=0.003):
    """Deterministic init mirroring the PyTorch module's __init__ shapes.

    PyTorch nn.Linear stores weight as [out, in]; we store the transpose
    [in, out] so the kernel does x @ W directly.
    """
    ks = jax.random.split(key, 8)

    def uniform(k, shape, bound):
        return jax.random.uniform(k, shape, jnp.float32, -bound, bound)

    b1_bound = 1.0 / jnp.sqrt(num_inputs)
    b2_bound = 1.0 / jnp.sqrt(hidden_size)

    return {
        "w1": uniform(ks[0], (num_inputs, hidden_size), b1_bound),
        "b1": uniform(ks[1], (1, hidden_size), b1_bound),
        "w2": uniform(ks[2], (hidden_size, hidden_size), b2_bound),
        "b2": uniform(ks[3], (1, hidden_size), b2_bound),
        "wm": uniform(ks[4], (hidden_size, num_actions), init_w),
        "bm": uniform(ks[5], (1, num_actions), init_w),
        "ws": uniform(ks[6], (hidden_size, num_actions), init_w),
        "bs": uniform(ks[7], (1, num_actions), init_w),
    }


def reference_forward(state, params):
    """Pure-JAX reference matching the PyTorch forward semantics."""
    h1 = jnp.maximum(state @ params["w1"] + params["b1"], 0.0)
    h2 = jnp.maximum(h1 @ params["w2"] + params["b2"], 0.0)
    mean = h2 @ params["wm"] + params["bm"]
    log_std = jnp.clip(h2 @ params["ws"] + params["bs"], LOG_STD_MIN, LOG_STD_MAX)
    return mean, log_std


if __name__ == "__main__":
    # TORCS state: angle(1)+track(19)+trackPos(1)+speedX/Y/Z(3)+wheelSpinVel(4)+rpm(1) = 29
    NUM_INPUTS = 29
    NUM_ACTIONS = 3      # steer, accel, brake
    HIDDEN = 32
    BATCH = 2

    key = jax.random.PRNGKey(0)
    k_state, k_params, k_big = jax.random.split(key, 3)

    state = jax.random.normal(k_state, (BATCH, NUM_INPUTS), dtype=jnp.float32)
    params = init_params(k_params, NUM_INPUTS, NUM_ACTIONS, HIDDEN)
    mean_ref, log_std_ref = reference_forward(state, params)

    # --- f32 path: exact check against pure-JAX reference --------------------
    packed_f32 = pack_params(params, NUM_INPUTS, NUM_ACTIONS, HIDDEN, jnp.float32)
    mean, log_std = policy_forward(state, packed_f32, num_actions=NUM_ACTIONS)
    jax.block_until_ready((mean, log_std))

    assert mean.shape == (BATCH, NUM_ACTIONS)
    assert log_std.shape == (BATCH, NUM_ACTIONS)
    assert jnp.allclose(mean, mean_ref, atol=1e-5, rtol=1e-5)
    assert jnp.allclose(log_std, log_std_ref, atol=1e-5, rtol=1e-5)

    # --- multi-tile path (grid >= 2, both v7x TensorCores) --------------------
    big_state = jax.random.normal(k_big, (300, NUM_INPUTS), dtype=jnp.float32)
    mean_big, log_std_big = policy_forward(big_state, packed_f32,
                                           num_actions=NUM_ACTIONS)
    jax.block_until_ready((mean_big, log_std_big))
    mean_big_ref, log_std_big_ref = reference_forward(big_state, params)
    assert mean_big.shape == (300, NUM_ACTIONS)
    assert jnp.allclose(mean_big, mean_big_ref, atol=1e-5, rtol=1e-5)
    assert jnp.allclose(log_std_big, log_std_big_ref, atol=1e-5, rtol=1e-5)

    # --- bf16 weight/activation path (default on v5e/v6e/v7x; f32 accumulate) -
    packed_bf16 = pack_params(params, NUM_INPUTS, NUM_ACTIONS, HIDDEN, jnp.bfloat16)
    mean_b, log_std_b = policy_forward(state, packed_bf16, num_actions=NUM_ACTIONS)
    jax.block_until_ready((mean_b, log_std_b))
    assert jnp.allclose(mean_b, mean_ref, atol=3e-2)
    assert jnp.allclose(log_std_b, log_std_ref, atol=3e-2)

    print("KERNEL_OK")
</pallas_src>

<mosaic_0001>
module attributes {stable_mosaic.version = 11 : i64} {
  func.func @policy_kernel(%arg0: i32, %arg1: memref<8x32xf32, #tpu.memory_space<vmem>>, %arg2: memref<400x128xf32, #tpu.memory_space<vmem>>, %arg3: memref<8x128xf32, #tpu.memory_space<vmem>>) attributes {dimension_semantics = [#tpu.dimension_semantics<parallel>], iteration_bounds = array<i64: 1>, scalar_prefetch = 0 : i64, scratch_operands = 0 : i64, tpu.core_type = #tpu.core_type<tc>, window_params = [{transform_indices = @transform_0, window_bounds = array<i64: 8, 32>}, {pipeline_mode = #tpu.pipeline_mode<synchronous>, transform_indices = @transform_1, window_bounds = array<i64: 400, 128>}, {transform_indices = @transform_2, window_bounds = array<i64: 8, 128>}]} {
    %c0 = arith.constant 0 : index
    %c0_0 = arith.constant 0 : index
    %0 = vector.load %arg1[%c0, %c0_0] : memref<8x32xf32, #tpu.memory_space<vmem>>, vector<8x32xf32>
    %c0_1 = arith.constant 0 : index
    %c0_2 = arith.constant 0 : index
    %1 = vector.load %arg2[%c0_1, %c0_2] : memref<400x128xf32, #tpu.memory_space<vmem>>, vector<32x128xf32>
    %c128 = arith.constant 128 : index
    %c0_3 = arith.constant 0 : index
    %2 = vector.load %arg2[%c128, %c0_3] : memref<400x128xf32, #tpu.memory_space<vmem>>, vector<128x128xf32>
    %c256 = arith.constant 256 : index
    %c0_4 = arith.constant 0 : index
    %3 = vector.load %arg2[%c256, %c0_4] : memref<400x128xf32, #tpu.memory_space<vmem>>, vector<128x128xf32>
    %c384 = arith.constant 384 : index
    %c0_5 = arith.constant 0 : index
    %4 = vector.load %arg2[%c384, %c0_5] : memref<400x128xf32, #tpu.memory_space<vmem>>, vector<16x128xf32>
    %5 = vector.extract_strided_slice %4 {offsets = [0, 0], sizes = [1, 128], strides = [1, 1]} : vector<16x128xf32> to vector<1x128xf32>
    %6 = vector.extract_strided_slice %4 {offsets = [1, 0], sizes = [1, 128], strides = [1, 1]} : vector<16x128xf32> to vector<1x128xf32>
    %7 = vector.extract_strided_slice %4 {offsets = [2, 0], sizes = [1, 128], strides = [1, 1]} : vector<16x128xf32> to vector<1x128xf32>
    %8 = vector.extract_strided_slice %4 {offsets = [3, 0], sizes = [1, 128], strides = [1, 1]} : vector<16x128xf32> to vector<1x128xf32>
    %9 = vector.extract_strided_slice %4 {offsets = [4, 0], sizes = [1, 128], strides = [1, 1]} : vector<16x128xf32> to vector<1x128xf32>
    %cst = arith.constant dense<0.000000e+00> : vector<8x128xf32>
    %10 = tpu.matmul %0, %1, %cst {dimension_numbers = #tpu.dot_dimension_numbers<[1], [0], [0], [1], [0, 0, 1, 1], [], []>} : vector<8x32xf32>, vector<32x128xf32>, vector<8x128xf32> -> vector<8x128xf32>
    %11 = vector.broadcast %5 : vector<1x128xf32> to vector<8x128xf32>
    %12 = arith.addf %10, %11 : vector<8x128xf32>
    %cst_6 = arith.constant 0.000000e+00 : f32
    %13 = vector.broadcast %cst_6 : f32 to vector<8x128xf32>
    %14 = arith.maximumf %12, %13 : vector<8x128xf32>
    %cst_7 = arith.constant dense<0.000000e+00> : vector<8x128xf32>
    %15 = tpu.matmul %14, %2, %cst_7 {dimension_numbers = #tpu.dot_dimension_numbers<[1], [0], [0], [1], [0, 0, 1, 1], [], []>} : vector<8x128xf32>, vector<128x128xf32>, vector<8x128xf32> -> vector<8x128xf32>
    %16 = vector.broadcast %6 : vector<1x128xf32> to vector<8x128xf32>
    %17 = arith.addf %15, %16 : vector<8x128xf32>
    %cst_8 = arith.constant 0.000000e+00 : f32
    %18 = vector.broadcast %cst_8 : f32 to vector<8x128xf32>
    %19 = arith.maximumf %17, %18 : vector<8x128xf32>
    %cst_9 = arith.constant dense<0.000000e+00> : vector<8x128xf32>
    %20 = tpu.matmul %19, %3, %cst_9 {dimension_numbers = #tpu.dot_dimension_numbers<[1], [0], [0], [1], [0, 0, 1, 1], [], []>} : vector<8x128xf32>, vector<128x128xf32>, vector<8x128xf32> -> vector<8x128xf32>
    %21 = vector.broadcast %7 : vector<1x128xf32> to vector<8x128xf32>
    %22 = arith.addf %20, %21 : vector<8x128xf32>
    %23 = vector.broadcast %8 : vector<1x128xf32> to vector<8x128xf32>
    %24 = arith.maximumf %22, %23 : vector<8x128xf32>
    %25 = vector.broadcast %9 : vector<1x128xf32> to vector<8x128xf32>
    %26 = arith.minimumf %24, %25 : vector<8x128xf32>
    %c0_10 = arith.constant 0 : index
    %c0_11 = arith.constant 0 : index
    %27 = vector.load %arg3[%c0_10, %c0_11] : memref<8x128xf32, #tpu.memory_space<vmem>>, vector<8x128xf32>
    tpu.vector_store %arg3[%c0_10, %c0_11], %26 {strides = array<i32>} : memref<8x128xf32, #tpu.memory_space<vmem>>, vector<8x128xf32>,
    return
  }
  func.func @transform_0(%arg0: i32) -> (i32, i32) {
    %c0_i32 = arith.constant 0 : i32
    %c0_i32_0 = arith.constant 0 : i32
    return %arg0, %c0_i32 : i32, i32
  }
  func.func @transform_1(%arg0: i32) -> (i32, i32) {
    %c0_i32 = arith.constant 0 : i32
    %c0_i32_0 = arith.constant 0 : i32
    %c0_i32_1 = arith.constant 0 : i32
    return %c0_i32, %c0_i32_0 : i32, i32
  }
  func.func @transform_2(%arg0: i32) -> (i32, i32) {
    %c0_i32 = arith.constant 0 : i32
    %c0_i32_0 = arith.constant 0 : i32
    return %arg0, %c0_i32 : i32, i32
  }
}

</mosaic_0001>

<llo_original>
// kernel: policy_forward.1
$region0: #{policy_forward.1}
  #allocation0 [shape = 'u32[]', space=smem, size = 0x4, offset = 0x4, fixed_abs, tag = 'smem constant byte address 0x4 - core index']
  #allocation1 [shape = 'u32[72,128]{1,0:T(1,128)}', space=vmem, size = 0x9000, scoped, tag = 'internal scratch']
  %s0 = inlined_call_operand.vmem [shape: f32[8,32], index: 0, kind: input, shape index: {}]
  %s1 = inlined_call_operand.hbm [shape: f32[400,128], index: 1, kind: input, shape index: {}]
  %s2 = inlined_call_operand.vmem [shape: f32[8,128], index: 2, kind: output, shape index: {}]
  %s3 = sld [smem:[#allocation0]]
  $region22: #{policy_forward.1} parent=0
    _
  %s5 = ssub.s32 1, %s3
  %s6 = scalar_select 0, %s5, %s3
  $region1: #{policy_forward.1} parent=0
    #allocation2 [shape = 'u8[204800]{0}', space=vmem, size = 0x32000, scoped, tag = 'input window, operand 1, single buffered']
    #allocation3 [shape = 's32[1]{0}', space=sflag, size = 0x4, scoped, tag = 'scoped memory for policy_forward.1']
    %7 = vsyncpa [#allocation3], 0
    // Predicated region
    $region2: #{policy_forward.1} parent=1 // pred_check
      _
    $region3: #{policy_forward.1} parent=1 // pred_check_branch
      %9 = sbr.rel (0) target = $region5
    $region4: #{policy_forward.1} parent=1 // pred_region
      _
    $region5: #{policy_forward.1} parent=1 // pred_fallthru
      _
    // Predicated region
    $region6: #{policy_forward.1} parent=1 // pred_check
      _
    $region7: #{policy_forward.1} parent=1 // pred_check_branch
      %11 = sbr.rel (0) target = $region9
    $region8: #{policy_forward.1} parent=1 // pred_region
      %13 = vsyncadd [#allocation3], 0
      %s14 = sshll.u32 %s1, 4
      %s15 = int_to_ptr.hbm [resolvable:$true] %s14
      %s16 = sshll.u32 [#allocation2], 4
      %s17 = int_to_ptr.vmem [resolvable:$true] %s16
      %22 = dma.hbm_to_vmem [thread:$0]  %s15, 6400, %s17, [#allocation3], 128, 128, 8
    $region9: #{policy_forward.1} parent=1 // pred_fallthru
      _
    // Predicated region
    $region10: #{policy_forward.1} parent=1 // pred_check
      _
    $region11: #{policy_forward.1} parent=1 // pred_check_branch
      %24 = sbr.rel (0) target = $region13
    $region12: #{policy_forward.1} parent=1 // pred_region
      %26 = dma.done [#allocation3], 6400
    $region13: #{policy_forward.1} parent=1 // pred_fallthru
      _
    %v27 = vld [vmem:[%s0] sm:$0xff]
    %v28 = vld [vmem:[#allocation2] sm:$0xff]
    %v29 = vld [vmem:[#allocation2 + $0x8] sm:$0xff]
    %v30 = vld [vmem:[#allocation2 + $0x10] sm:$0xff]
    %v31 = vld [vmem:[#allocation2 + $0x18] sm:$0xff]
    %v32 = vld [vmem:[#allocation2 + $0x80] sm:$0xff]
    %v33 = vld [vmem:[#allocation2 + $0x88] sm:$0xff]
    %v34 = vld [vmem:[#allocation2 + $0x90] sm:$0xff]
    %v35 = vld [vmem:[#allocation2 + $0x98] sm:$0xff]
    %v36 = vld [vmem:[#allocation2 + $0xa0] sm:$0xff]
    %v37 = vld [vmem:[#allocation2 + $0xa8] sm:$0xff]
    %v38 = vld [vmem:[#allocation2 + $0xb0] sm:$0xff]
    %v39 = vld [vmem:[#allocation2 + $0xb8] sm:$0xff]
    %v40 = vld [vmem:[#allocation2 + $0xc0] sm:$0xff]
    %v41 = vld [vmem:[#allocation2 + $0xc8] sm:$0xff]
    %v42 = vld [vmem:[#allocation2 + $0xd0] sm:$0xff]
    %v43 = vld [vmem:[#allocation2 + $0xd8] sm:$0xff]
    %v44 = vld [vmem:[#allocation2 + $0xe0] sm:$0xff]
    %v45 = vld [vmem:[#allocation2 + $0xe8] sm:$0xff]
    %v46 = vld [vmem:[#allocation2 + $0xf0] sm:$0xff]
    %v47 = vld [vmem:[#allocation2 + $0xf8] sm:$0xff]
    %v48 = vld [vmem:[#allocation2 + $0x100] sm:$0xff]
    %v49 = vld [vmem:[#allocation2 + $0x108] sm:$0xff]
    %v50 = vld [vmem:[#allocation2 + $0x110] sm:$0xff]
    %v51 = vld [vmem:[#allocation2 + $0x118] sm:$0xff]
    %v52 = vld [vmem:[#allocation2 + $0x120] sm:$0xff]
    %v53 = vld [vmem:[#allocation2 + $0x128] sm:$0xff]
    %v54 = vld [vmem:[#allocation2 + $0x130] sm:$0xff]
    %v55 = vld [vmem:[#allocation2 + $0x138] sm:$0xff]
    %v56 = vld [vmem:[#allocation2 + $0x140] sm:$0xff]
    %v57 = vld [vmem:[#allocation2 + $0x148] sm:$0xff]
    %v58 = vld [vmem:[#allocation2 + $0x150] sm:$0xff]
    %v59 = vld [vmem:[#allocation2 + $0x158] sm:$0xff]
    %v60 = vld [vmem:[#allocation2 + $0x160] sm:$0xff]
    %v61 = vld [vmem:[#allocation2 + $0x168] sm:$0xff]
    %v62 = vld [vmem:[#allocation2 + $0x170] sm:$0xff]
    %v63 = vld [vmem:[#allocation2 + $0x178] sm:$0xff]
    %v64 = vld [vmem:[#allocation2 + $0x180] sm:$0xff]
    %v65 = vperm.slane %v64, 0
    %vm66 = vcmask 261120
    %v68 = vsel %vm66, %v27, 0
    %70 = vmatpush.msra.mxu0 0.0
    %71 = vmatpush.msra.mxu0 0.0
    %72 = vmatpush.msra.mxu0 0.0
    %73 = vmatpush.msra.mxu0 0.0
    %74 = vmatpush.msra.mxu0 0.0
    %75 = vmatpush.msra.mxu0 0.0
    %76 = vmatpush.msra.mxu0 0.0
    %77 = vmatpush.msra.mxu0 0.0
    %78 = vmatpush.msra.mxu0 0.0
    %79 = vmatpush.msra.mxu0 0.0
    %80 = vmatpush.msra.mxu0 0.0
    %81 = vmatpush.msra.mxu0 0.0
    %82 = vmatpush.msra.mxu0 %v31
    %83 = vmatpush.msra.mxu0 %v30
    %84 = vmatpush.msra.mxu0 %v29
    %85 = vmatpush.msra.mxu0 %v28
    %86 = vmatmul.f32.gmra.mxu0 %v68
    %v87 = vpop.f32.mrf.mxu0
    %v88 = vadd.f32 %v65, %v87
    %89 = vdwg.mxu0
    %v90 = vmax.f32 %v88, 0.0
    %v91 = vperm.slane %v64, 1
    %92 = vmatpush.msra.mxu0 %v47
    %93 = vmatpush.msra.mxu0 %v46
    %94 = vmatpush.msra.mxu0 %v45
    %95 = vmatpush.msra.mxu0 %v44
    %96 = vmatpush.msra.mxu0 %v43
    %97 = vmatpush.msra.mxu0 %v42
    %98 = vmatpush.msra.mxu0 %v41
    %99 = vmatpush.msra.mxu0 %v40
    %100 = vmatpush.msra.mxu0 %v39
    %101 = vmatpush.msra.mxu0 %v38
    %102 = vmatpush.msra.mxu0 %v37
    %103 = vmatpush.msra.mxu0 %v36
    %104 = vmatpush.msra.mxu0 %v35
    %105 = vmatpush.msra.mxu0 %v34
    %106 = vmatpush.msra.mxu0 %v33
    %107 = vmatpush.msra.mxu0 %v32
    %108 = vmatmul.f32.gmra.mxu0 %v90
    %v109 = vpop.f32.mrf.mxu0
    %v110 = vadd.f32 %v91, %v109
    %111 = vdwg.mxu0
    %v112 = vmax.f32 %v110, 0.0
    %v113 = vperm.slane %v64, 2
    %114 = vmatpush.msra.mxu0 %v63
    %115 = vmatpush.msra.mxu0 %v62
    %116 = vmatpush.msra.mxu0 %v61
    %117 = vmatpush.msra.mxu0 %v60
    %118 = vmatpush.msra.mxu0 %v59
    %119 = vmatpush.msra.mxu0 %v58
    %120 = vmatpush.msra.mxu0 %v57
    %121 = vmatpush.msra.mxu0 %v56
    %122 = vmatpush.msra.mxu0 %v55
    %123 = vmatpush.msra.mxu0 %v54
    %124 = vmatpush.msra.mxu0 %v53
    %125 = vmatpush.msra.mxu0 %v52
    %126 = vmatpush.msra.mxu0 %v51
    %127 = vmatpush.msra.mxu0 %v50
    %128 = vmatpush.msra.mxu0 %v49
    %129 = vmatpush.msra.mxu0 %v48
    %130 = vmatmul.f32.gmra.mxu0 %v112
    %v131 = vpop.f32.mrf.mxu0
    %v132 = vadd.f32 %v113, %v131
    %133 = vdwg.mxu0
    %v134 = vperm.slane %v64, 3
    %v135 = vmax.f32 %v132, %v134
    %v136 = vperm.slane %v64, 4
    %v137 = vmin.f32 %v135, %v136
    %138 = vst [vmem:[%s2] sm:$0xff] %v137
    // Predicated region
    $region14: #{policy_forward.1} parent=1 // pred_check
      _
    $region15: #{policy_forward.1} parent=1 // pred_check_branch
      %140 = sbr.rel (0) target = $region17
    $region16: #{policy_forward.1} parent=1 // pred_region
      _
    $region17: #{policy_forward.1} parent=1 // pred_fallthru
      _
    // Predicated region
    $region18: #{policy_forward.1} parent=1 // pred_check
      _
    $region19: #{policy_forward.1} parent=1 // pred_check_branch
      %142 = sbr.rel (0) target = $region21
    $region20: #{policy_forward.1} parent=1 // pred_region
      _
    $region21: #{policy_forward.1} parent=1 // pred_fallthru
      _
    %143 = vsyncpa [#allocation3], 1

</llo_original>
